<compile_context>
chip_gen: v5e
topology: v5e:2x2
jax: 0.10.0
libtpu: 0.0.40
codegen_flags: <defaults>
</compile_context>

<pallas_src>
import functools

import jax
import jax.numpy as jnp
from jax.experimental import pallas as pl
from jax.experimental.pallas import tpu as pltpu


def _raw_scores_kernel(pred_ref, uz_ref, lz_ref, u_ref, d_ref, un2_ref, dmin_ref,
                       *, m_total, tile_m, mask_m_tail, precision):
    """Raw entropy + running-min squared L2 distance for one (batch, L_z) tile pair.

    Grid: (batch tiles ['parallel'], L_z tiles ['arbitrary'], innermost).
      pred_ref: [TB, C]   log-softmax rows           (block constant across mj)
      uz_ref  : [TB, Z]   unlabeled latents          (block constant across mj)
      lz_ref  : [TM, Z]   labeled latent tile
      u_ref   : [1, TB]   raw entropy per row        (written at mj == 0)
      d_ref   : [1, TB]   raw min L2 distance        (written at last mj)
      un2_ref : [1, TB]   scratch: ||u||^2 per row   (computed at mj == 0)
      dmin_ref: [1, TB]   scratch: running min dist^2 across L_z tiles
    """
    mj = pl.program_id(1)
    uz = uz_ref[...].astype(jnp.float32)                        # [TB, Z]

    @pl.when(mj == 0)
    def _():
        # Entropy: -sum_c exp(p)*p, done as a (1,C) x (TB,C)^T matmul so the
        # result is lane-dense (1, TB) by construction (full-lane stores, MXU).
        p = pred_ref[...].astype(jnp.float32)                   # [TB, C]
        e = jnp.exp(p) * p                                      # [TB, C]
        ones_c = jnp.ones((1, e.shape[1]), jnp.float32)
        u_ref[...] = -jax.lax.dot_general(
            ones_c, e, (((1,), (1,)), ((), ())),
            precision=precision, preferred_element_type=jnp.float32)
        # ||u||^2 per row, likewise lane-dense; reused across all L_z tiles.
        ones_z = jnp.ones((1, uz.shape[1]), jnp.float32)
        un2_ref[...] = jax.lax.dot_general(
            ones_z, uz * uz, (((1,), (1,)), ((), ())),
            precision=precision, preferred_element_type=jnp.float32)
        dmin_ref[...] = jnp.full(dmin_ref.shape, jnp.float32(jnp.inf),
                                 dmin_ref.dtype)

    # Min-L2 via ||u||^2 + ||l||^2 - 2 u.l with f32 accumulation on the MXU.
    lz = lz_ref[...].astype(jnp.float32)                        # [TM, Z]
    ln2 = jnp.sum(lz * lz, axis=-1, keepdims=True)              # [TM, 1]
    cross = jax.lax.dot_general(
        lz, uz, (((1,), (1,)), ((), ())),
        precision=precision, preferred_element_type=jnp.float32)  # [TM, TB]
    dist2 = jnp.maximum(un2_ref[...] + ln2 - 2.0 * cross, 0.0)    # [TM, TB]
    if mask_m_tail:
        # Ragged last L_z tile: out-of-range rows read garbage -> exclude them.
        row = mj * tile_m + jax.lax.broadcasted_iota(jnp.int32, dist2.shape, 0)
        dist2 = jnp.where(row < m_total, dist2, jnp.float32(jnp.inf))
    dmin_ref[...] = jnp.minimum(dmin_ref[...],
                                jnp.min(dist2, axis=0, keepdims=True))

    @pl.when(mj == pl.num_programs(1) - 1)
    def _():
        d_ref[...] = jnp.sqrt(dmin_ref[...])


def _vmem_capacity_bytes():
    try:
        cap = getattr(pltpu.get_tpu_info(), "vmem_capacity_bytes", None)
        if cap:
            return int(cap)
    except Exception:
        pass
    return 64 << 20     # conservative default (v7x has the smallest VMEM)


def _choose_tile_b(batch, c, z, itemsize, vmem_cap):
    # Small batch: one tile whose block shape equals the full array dims
    # (no (8,128) divisibility concerns, no ragged tail).
    if batch < 256:
        return batch
    small_vmem = vmem_cap <= (80 << 20)          # v7x (64 MiB) vs v5e/v6e (128 MiB)
    cap = 512 if small_vmem else 1024
    budget = vmem_cap // 4
    t = cap
    while t > 128:
        working = (2 * t * (c + z) * itemsize    # double-buffered pred/U_z tiles
                   + t * (c + z) * 4)            # f32 elementwise temporaries
        # Require >= 2 tiles once batch >= 256 so v7x can shard the 'parallel'
        # axis across both TensorCores.
        if working <= budget and pl.cdiv(batch, t) >= 2:
            return t
        t //= 2
    return 128


def _choose_tile_m(m, z, tile_b, itemsize, vmem_cap):
    # Whole labeled pool stays VMEM-resident while that is cheap; otherwise it
    # is streamed over the 'arbitrary' grid axis with a running-min scratch.
    if m <= 512 or 2 * m * z * itemsize <= (4 << 20):
        return m
    budget = vmem_cap // 8
    t = 1024 if vmem_cap > (80 << 20) else 512
    while t > 256 and (2 * t * z * itemsize + t * tile_b * 4) > budget:
        t //= 2
    return min(t, m)


def _vmem_limit_bytes(tile_b, tile_m, c, z, in_itemsize, lz_itemsize, vmem_cap):
    f32 = 4
    need = (2 * tile_b * c * in_itemsize     # pred tile, double-buffered
            + 2 * tile_b * z * in_itemsize   # U_z tile, double-buffered
            + 2 * tile_m * z * lz_itemsize   # L_z tile, double-buffered
            + tile_b * c * f32               # exp(p)*p temporary
            + tile_b * z * f32               # uz*uz temporary
            + 2 * tile_m * tile_b * f32      # cross / dist2 buffers
            + 10 * tile_b * f32)             # (1,TB) outputs (x2, dbl-buf) + scratch
    need = 2 * need + (8 << 20)              # compiler temporaries + headroom
    hi = min(vmem_cap - (16 << 20), 96 << 20)   # <=48 MiB on v7x, <=96 MiB v5e/v6e
    return int(max(16 << 20, min(need, hi)))


def diversity_uncertainty(pred, U_z, L_z, lambda_=1.0, precision=None):
    """JAX/Pallas equivalent of DiversityUncertainty.forward(pred, U_z, L_z).

    Pass precision=jax.lax.Precision.HIGHEST if the expanded-form distance must
    match full-f32 fidelity for very large labeled pools (extra MXU passes).
    """
    batch, c = pred.shape
    assert U_z.shape[0] == batch
    U_z = U_z.reshape(batch, -1)
    z = U_z.shape[1]

    m = int(L_z.shape[0])
    has_labeled = m > 0
    if has_labeled:
        L_z2 = L_z.reshape(m, -1)
        assert L_z2.shape[1] == z
    else:
        # Dummy row keeps kernel shapes static; its distances are discarded below.
        L_z2 = jnp.zeros((1, z), U_z.dtype)
        m = 1

    vmem_cap = _vmem_capacity_bytes()
    in_itemsize = max(pred.dtype.itemsize, U_z.dtype.itemsize)
    tile_b = _choose_tile_b(batch, c, z, in_itemsize, vmem_cap)
    tile_m = _choose_tile_m(m, z, tile_b, L_z2.dtype.itemsize, vmem_cap)
    nb = pl.cdiv(batch, tile_b)
    nm = pl.cdiv(m, tile_m)

    kernel = functools.partial(
        _raw_scores_kernel, m_total=m, tile_m=tile_m,
        mask_m_tail=(m % tile_m) != 0, precision=precision)

    cost = pl.CostEstimate(
        flops=int(2 * batch * m * z + 2 * batch * z + 4 * batch * c
                  + 5 * batch * m),
        transcendentals=int(batch * c),
        bytes_accessed=int(batch * c * pred.dtype.itemsize
                           + batch * z * U_z.dtype.itemsize
                           + m * z * L_z2.dtype.itemsize * (nb if nm > 1 else 1)
                           + 2 * 4 * batch),
    )

    u_raw, d_raw = pl.pallas_call(
        kernel,
        out_shape=(jax.ShapeDtypeStruct((1, batch), jnp.float32),
                   jax.ShapeDtypeStruct((1, batch), jnp.float32)),
        grid=(nb, nm),
        in_specs=[
            pl.BlockSpec((tile_b, c), lambda i, j: (i, 0)),
            pl.BlockSpec((tile_b, z), lambda i, j: (i, 0)),
            pl.BlockSpec((tile_m, z), lambda i, j: (j, 0)),
        ],
        out_specs=(
            pl.BlockSpec((1, tile_b), lambda i, j: (0, i)),
            pl.BlockSpec((1, tile_b), lambda i, j: (0, i)),
        ),
        scratch_shapes=[pltpu.VMEM((1, tile_b), jnp.float32),   # ||u||^2 per row
                        pltpu.VMEM((1, tile_b), jnp.float32)],  # running min dist^2
        compiler_params=pltpu.CompilerParams(
            dimension_semantics=("parallel", "arbitrary"),
            vmem_limit_bytes=_vmem_limit_bytes(
                tile_b, tile_m, c, z, in_itemsize, L_z2.dtype.itemsize, vmem_cap)),
        cost_estimate=cost,
    )(pred, U_z, L_z2)

    # Global min/max normalisation + lambda*u + d on tiny (B,) vectors in plain
    # jnp (saves a kernel launch; no VMEM hazard for huge B).
    u = u_raw[0]
    u = u - jnp.min(u)
    u = u / (jnp.max(u) + 1e-18)
    if has_labeled:
        d = d_raw[0]
        d = d - jnp.min(d)
        d = d / (jnp.max(d) + 1e-18)
    else:
        d = jnp.ones((batch,), jnp.float32)   # reference: ones, no normalisation
    return lambda_ * u + d


def _reference(pred, U_z, L_z, lam=1.0):
    u = -jnp.sum(jnp.exp(pred) * pred, axis=-1)
    u = u - jnp.min(u)
    u = u / (jnp.max(u) + 1e-18)
    if L_z.shape[0] > 0:
        lz = L_z.reshape(L_z.shape[0], -1)
        diff = lz[None, :, :] - U_z[:, None, :]
        d = jnp.sqrt(jnp.sum(diff * diff, axis=-1)).min(axis=-1)
        d = d - jnp.min(d)
        d = d / (jnp.max(d) + 1e-18)
    else:
        d = jnp.ones(U_z.shape[0], jnp.float32)
    return lam * u + d


if __name__ == "__main__":
    key = jax.random.PRNGKey(0)
    k_logits, k_uz, k_lz = jax.random.split(key, 3)

    B, C = 8, 16       # unlabeled batch, number of classes
    M, Z = 4, 100      # labeled pool size, latent dim (module default nz=100)

    logits = jax.random.normal(k_logits, (B, C), jnp.float32)
    pred = jax.nn.log_softmax(logits, axis=-1)          # log-probabilities
    U_z = jax.random.normal(k_uz, (B, Z), jnp.float32)
    L_z = jax.random.normal(k_lz, (M, Z), jnp.float32)

    score = diversity_uncertainty(pred, U_z, L_z, lambda_=1.0)
    score = jax.block_until_ready(score)
    ref = _reference(pred, U_z, L_z, 1.0)
    assert score.shape == (B,)
    # tolerance covers the ||a||^2+||b||^2-2ab formulation vs direct differences
    assert jnp.allclose(score, ref, atol=1e-4, rtol=1e-4), (score, ref)

    # Empty labeled pool branch: d == ones, no normalisation of d.
    L_empty = jnp.zeros((0, Z), jnp.float32)
    score0 = jax.block_until_ready(diversity_uncertainty(pred, U_z, L_empty))
    ref0 = _reference(pred, U_z, L_empty, 1.0)
    assert jnp.allclose(score0, ref0, atol=1e-4, rtol=1e-4), (score0, ref0)

    print("KERNEL_OK")
</pallas_src>

<mosaic_0001>
module attributes {stable_mosaic.version = 11 : i64} {
  func.func @_raw_scores_kernel(%arg0: i32, %arg1: i32, %arg2: memref<8x16xf32, #tpu.memory_space<vmem>>, %arg3: memref<8x100xf32, #tpu.memory_space<vmem>>, %arg4: memref<4x100xf32, #tpu.memory_space<vmem>>, %arg5: memref<1x8xf32, #tpu.memory_space<vmem>>, %arg6: memref<1x8xf32, #tpu.memory_space<vmem>>, %arg7: memref<1x8xf32, #tpu.memory_space<vmem>>, %arg8: memref<1x8xf32, #tpu.memory_space<vmem>>) attributes {dimension_semantics = [#tpu.dimension_semantics<parallel>, #tpu.dimension_semantics<arbitrary>], iteration_bounds = array<i64: 1, 1>, scalar_prefetch = 0 : i64, scratch_operands = 2 : i64, tpu.core_type = #tpu.core_type<tc>, window_params = [{transform_indices = @transform_0, window_bounds = array<i64: 8, 16>}, {transform_indices = @transform_1, window_bounds = array<i64: 8, 100>}, {transform_indices = @transform_2, window_bounds = array<i64: 4, 100>}, {transform_indices = @transform_3, window_bounds = array<i64: 1, 8>}, {transform_indices = @transform_4, window_bounds = array<i64: 1, 8>}]} {
    %c0 = arith.constant 0 : index
    %c0_0 = arith.constant 0 : index
    %0 = vector.load %arg3[%c0, %c0_0] : memref<8x100xf32, #tpu.memory_space<vmem>>, vector<8x100xf32>
    %c0_i32 = arith.constant 0 : i32
    %1 = arith.cmpi eq, %arg1, %c0_i32 : i32
    %2 = arith.extui %1 : i1 to i32
    %c0_i32_1 = arith.constant 0 : i32
    %3 = arith.cmpi ne, %2, %c0_i32_1 : i32
    scf.if %3 {
      %c0_16 = arith.constant 0 : index
      %c0_17 = arith.constant 0 : index
      %26 = vector.load %arg2[%c0_16, %c0_17] : memref<8x16xf32, #tpu.memory_space<vmem>>, vector<8x16xf32>
      %27 = math.exp %26 : vector<8x16xf32>
      %28 = arith.mulf %27, %26 : vector<8x16xf32>
      %cst_18 = arith.constant 1.000000e+00 : f32
      %29 = vector.broadcast %cst_18 : f32 to vector<1x16xf32>
      %cst_19 = arith.constant dense<0.000000e+00> : vector<1x8xf32>
      %30 = tpu.matmul %29, %28, %cst_19 {dimension_numbers = #tpu.dot_dimension_numbers<[1], [1], [0], [0], [0, 0, 1, 0], [], []>} : vector<1x16xf32>, vector<8x16xf32>, vector<1x8xf32> -> vector<1x8xf32>
      %cst_20 = arith.constant 0.000000e+00 : f32
      %31 = vector.broadcast %cst_20 : f32 to vector<1x8xf32>
      %32 = arith.subf %31, %30 : vector<1x8xf32>
      %c0_21 = arith.constant 0 : index
      %c0_22 = arith.constant 0 : index
      %33 = vector.load %arg5[%c0_21, %c0_22] : memref<1x8xf32, #tpu.memory_space<vmem>>, vector<1x8xf32>
      tpu.vector_store %arg5[%c0_21, %c0_22], %32 {strides = array<i32>} : memref<1x8xf32, #tpu.memory_space<vmem>>, vector<1x8xf32>,
      %cst_23 = arith.constant 1.000000e+00 : f32
      %34 = vector.broadcast %cst_23 : f32 to vector<1x100xf32>
      %35 = arith.mulf %0, %0 : vector<8x100xf32>
      %cst_24 = arith.constant dense<0.000000e+00> : vector<1x8xf32>
      %36 = tpu.matmul %34, %35, %cst_24 {dimension_numbers = #tpu.dot_dimension_numbers<[1], [1], [0], [0], [0, 0, 1, 0], [], []>} : vector<1x100xf32>, vector<8x100xf32>, vector<1x8xf32> -> vector<1x8xf32>
      %c0_25 = arith.constant 0 : index
      %c0_26 = arith.constant 0 : index
      %37 = vector.load %arg7[%c0_25, %c0_26] : memref<1x8xf32, #tpu.memory_space<vmem>>, vector<1x8xf32>
      tpu.vector_store %arg7[%c0_25, %c0_26], %36 {strides = array<i32>} : memref<1x8xf32, #tpu.memory_space<vmem>>, vector<1x8xf32>,
      %cst_27 = arith.constant 0x7F800000 : f32
      %38 = vector.broadcast %cst_27 : f32 to vector<1x8xf32>
      %c0_28 = arith.constant 0 : index
      %c0_29 = arith.constant 0 : index
      %39 = vector.load %arg8[%c0_28, %c0_29] : memref<1x8xf32, #tpu.memory_space<vmem>>, vector<1x8xf32>
      tpu.vector_store %arg8[%c0_28, %c0_29], %38 {strides = array<i32>} : memref<1x8xf32, #tpu.memory_space<vmem>>, vector<1x8xf32>,
    } else {
    }
    %c0_2 = arith.constant 0 : index
    %c0_3 = arith.constant 0 : index
    %4 = vector.load %arg4[%c0_2, %c0_3] : memref<4x100xf32, #tpu.memory_space<vmem>>, vector<4x100xf32>
    %5 = arith.mulf %4, %4 : vector<4x100xf32>
    %cst = arith.constant dense<0.000000e+00> : vector<4xf32>
    %6 = vector.multi_reduction <add>, %5, %cst [1] : vector<4x100xf32> to vector<4xf32>
    %7 = vector.shape_cast %6 : vector<4xf32> to vector<4x1xf32>
    %cst_4 = arith.constant dense<0.000000e+00> : vector<4x8xf32>
    %8 = tpu.matmul %4, %0, %cst_4 {dimension_numbers = #tpu.dot_dimension_numbers<[1], [1], [0], [0], [0, 0, 1, 0], [], []>} : vector<4x100xf32>, vector<8x100xf32>, vector<4x8xf32> -> vector<4x8xf32>
    %c0_5 = arith.constant 0 : index
    %c0_6 = arith.constant 0 : index
    %9 = vector.load %arg7[%c0_5, %c0_6] : memref<1x8xf32, #tpu.memory_space<vmem>>, vector<1x8xf32>
    %10 = vector.broadcast %9 : vector<1x8xf32> to vector<4x8xf32>
    %11 = vector.broadcast %7 : vector<4x1xf32> to vector<4x8xf32>
    %12 = arith.addf %10, %11 : vector<4x8xf32>
    %cst_7 = arith.constant 2.000000e+00 : f32
    %13 = vector.broadcast %cst_7 : f32 to vector<4x8xf32>
    %14 = arith.mulf %13, %8 : vector<4x8xf32>
    %15 = arith.subf %12, %14 : vector<4x8xf32>
    %cst_8 = arith.constant 0.000000e+00 : f32
    %16 = vector.broadcast %cst_8 : f32 to vector<4x8xf32>
    %17 = arith.maximumf %15, %16 : vector<4x8xf32>
    %c0_9 = arith.constant 0 : index
    %c0_10 = arith.constant 0 : index
    %18 = vector.load %arg8[%c0_9, %c0_10] : memref<1x8xf32, #tpu.memory_space<vmem>>, vector<1x8xf32>
    %cst_11 = arith.constant dense<0x7F800000> : vector<8xf32>
    %19 = vector.multi_reduction <minimumf>, %17, %cst_11 [0] : vector<4x8xf32> to vector<8xf32>
    %20 = vector.shape_cast %19 : vector<8xf32> to vector<1x8xf32>
    %21 = arith.minimumf %18, %20 : vector<1x8xf32>
    %c0_12 = arith.constant 0 : index
    %c0_13 = arith.constant 0 : index
    %22 = vector.load %arg8[%c0_12, %c0_13] : memref<1x8xf32, #tpu.memory_space<vmem>>, vector<1x8xf32>
    tpu.vector_store %arg8[%c0_12, %c0_13], %21 {strides = array<i32>} : memref<1x8xf32, #tpu.memory_space<vmem>>, vector<1x8xf32>,
    %c0_i32_14 = arith.constant 0 : i32
    %23 = arith.cmpi eq, %arg1, %c0_i32_14 : i32
    %24 = arith.extui %23 : i1 to i32
    %c0_i32_15 = arith.constant 0 : i32
    %25 = arith.cmpi ne, %24, %c0_i32_15 : i32
    scf.if %25 {
      %c0_16 = arith.constant 0 : index
      %c0_17 = arith.constant 0 : index
      %26 = vector.load %arg8[%c0_16, %c0_17] : memref<1x8xf32, #tpu.memory_space<vmem>>, vector<1x8xf32>
      %27 = math.sqrt %26 : vector<1x8xf32>
      %c0_18 = arith.constant 0 : index
      %c0_19 = arith.constant 0 : index
      %28 = vector.load %arg6[%c0_18, %c0_19] : memref<1x8xf32, #tpu.memory_space<vmem>>, vector<1x8xf32>
      tpu.vector_store %arg6[%c0_18, %c0_19], %27 {strides = array<i32>} : memref<1x8xf32, #tpu.memory_space<vmem>>, vector<1x8xf32>,
    } else {
    }
    return
  }
  func.func @transform_0(%arg0: i32, %arg1: i32) -> (i32, i32) {
    %c0_i32 = arith.constant 0 : i32
    %c0_i32_0 = arith.constant 0 : i32
    return %arg0, %c0_i32 : i32, i32
  }
  func.func @transform_1(%arg0: i32, %arg1: i32) -> (i32, i32) {
    %c0_i32 = arith.constant 0 : i32
    %c0_i32_0 = arith.constant 0 : i32
    return %arg0, %c0_i32 : i32, i32
  }
  func.func @transform_2(%arg0: i32, %arg1: i32) -> (i32, i32) {
    %c0_i32 = arith.constant 0 : i32
    %c0_i32_0 = arith.constant 0 : i32
    return %arg1, %c0_i32 : i32, i32
  }
  func.func @transform_3(%arg0: i32, %arg1: i32) -> (i32, i32) {
    %c0_i32 = arith.constant 0 : i32
    %c0_i32_0 = arith.constant 0 : i32
    return %c0_i32, %arg0 : i32, i32
  }
  func.func @transform_4(%arg0: i32, %arg1: i32) -> (i32, i32) {
    %c0_i32 = arith.constant 0 : i32
    %c0_i32_0 = arith.constant 0 : i32
    return %c0_i32, %arg0 : i32, i32
  }
}

</mosaic_0001>

<llo_original>
// kernel: tpu_custom_call.1
$region0: #{tpu_custom_call.1}
  #allocation0 [shape = 'u32[]', space=smem, size = 0x4, offset = 0x4, fixed_abs, tag = 'smem constant byte address 0x4 - core index']
  #allocation1 [shape = 'u32[72,128]{1,0:T(1,128)}', space=vmem, size = 0x9000, scoped, tag = 'internal scratch']
  #allocation2 [shape = 'f32[1,8]{1,0:T(1,128)}', space=vmem, size = 0x200, scoped, tag = 'scratch operand']
  #allocation3 [shape = 'f32[1,8]{1,0:T(1,128)}', space=vmem, size = 0x200, scoped, tag = 'scratch operand']
  %s0 = inlined_call_operand.hbm [shape: f32[8,16], index: 0, kind: input, shape index: {}]
  %s1 = inlined_call_operand.hbm [shape: f32[8,100], index: 1, kind: input, shape index: {}]
  %s2 = inlined_call_operand.hbm [shape: f32[4,100], index: 2, kind: input, shape index: {}]
  %s3 = inlined_call_operand.hbm [shape: f32[1,8], index: 3, kind: output, shape index: {0}]
  %s4 = inlined_call_operand.hbm [shape: f32[1,8], index: 4, kind: output, shape index: {1}]
  %5 = xla_tuple %s3, %s4
  %s6 = sld [smem:[#allocation0]]
  $region50: #{tpu_custom_call.1} parent=0
    _
  %s8 = ssub.s32 1, %s6
  %s9 = scalar_select 0, %s8, %s6
  $region1: #{tpu_custom_call.1} parent=0
    #allocation4 [shape = 'u8[4096]{0}', space=vmem, size = 0x1000, scoped, tag = 'input window, operand 0, single buffered']
    #allocation5 [shape = 's32[1]{0}', space=sflag, size = 0x4, scoped, tag = 'scoped memory for tpu_custom_call.1']
    #allocation6 [shape = 's32[1]{0}', space=sflag, size = 0x4, scoped, tag = 'scoped memory for tpu_custom_call.1']
    #allocation7 [shape = 'u8[4096]{0}', space=vmem, size = 0x1000, scoped, tag = 'input window, operand 1, single buffered']
    #allocation8 [shape = 's32[1]{0}', space=sflag, size = 0x4, scoped, tag = 'scoped memory for tpu_custom_call.1']
    #allocation9 [shape = 'u8[2048]{0}', space=vmem, size = 0x800, scoped, tag = 'input window, operand 2, single buffered']
    #allocation10 [shape = 'u8[512]{0}', space=vmem, size = 0x400, scoped, tag = 'output window, operand 0, single buffered']
    #allocation11 [shape = 'u8[512]{0}', space=vmem, size = 0x400, scoped, tag = 'output window, operand 1, single buffered']
    #allocation12 [shape = 's32[1]{0}', space=sflag, size = 0x4, scoped, tag = 'scoped memory for tpu_custom_call.1']
    %10 = vsyncpa [#allocation5], 0
    %11 = vsyncpa [#allocation8], 0
    %12 = vsyncpa [#allocation6], 0
    %13 = vsyncpa [#allocation12], 0
    // Predicated region
    $region2: #{tpu_custom_call.1} parent=1 // pred_check
      _
    $region3: #{tpu_custom_call.1} parent=1 // pred_check_branch
      %15 = sbr.rel (0) target = $region5
    $region4: #{tpu_custom_call.1} parent=1 // pred_region
      %17 = vsyncadd [#allocation5], 0
      %s19 = sshll.u32 %s0, 4
      %s20 = int_to_ptr.hbm [resolvable:$true] %s19
      %s21 = sshll.u32 [#allocation4], 4
      %s22 = int_to_ptr.vmem [resolvable:$true] %s21
      %24 = dma.hbm_to_vmem [thread:$0]  %s20, 128, %s22, [#allocation5]
    $region5: #{tpu_custom_call.1} parent=1 // pred_fallthru
      _
    // Predicated region
    $region6: #{tpu_custom_call.1} parent=1 // pred_check
      _
    $region7: #{tpu_custom_call.1} parent=1 // pred_check_branch
      %26 = sbr.rel (0) target = $region9
    $region8: #{tpu_custom_call.1} parent=1 // pred_region
      %28 = vsyncadd [#allocation8], 0
      %s30 = sshll.u32 %s1, 4
      %s31 = int_to_ptr.hbm [resolvable:$true] %s30
      %s32 = sshll.u32 [#allocation7], 4
      %s33 = int_to_ptr.vmem [resolvable:$true] %s32
      %35 = dma.hbm_to_vmem [thread:$0]  %s31, 128, %s33, [#allocation8]
    $region9: #{tpu_custom_call.1} parent=1 // pred_fallthru
      _
    // Predicated region
    $region10: #{tpu_custom_call.1} parent=1 // pred_check
      _
    $region11: #{tpu_custom_call.1} parent=1 // pred_check_branch
      %37 = sbr.rel (0) target = $region13
    $region12: #{tpu_custom_call.1} parent=1 // pred_region
      %39 = vsyncadd [#allocation8], 0
      %s41 = sshll.u32 %s2, 4
      %s42 = int_to_ptr.hbm [resolvable:$true] %s41
      %s43 = sshll.u32 [#allocation9], 4
      %s44 = int_to_ptr.vmem [resolvable:$true] %s43
      %46 = dma.hbm_to_vmem [thread:$0]  %s42, 64, %s44, [#allocation8]
    $region13: #{tpu_custom_call.1} parent=1 // pred_fallthru
      _
    // Predicated region
    $region14: #{tpu_custom_call.1} parent=1 // pred_check
      _
    $region15: #{tpu_custom_call.1} parent=1 // pred_check_branch
      %48 = sbr.rel (0) target = $region17
    $region16: #{tpu_custom_call.1} parent=1 // pred_region
      %50 = dma.done [#allocation5], 128
    $region17: #{tpu_custom_call.1} parent=1 // pred_fallthru
      _
    // Predicated region
    $region18: #{tpu_custom_call.1} parent=1 // pred_check
      _
    $region19: #{tpu_custom_call.1} parent=1 // pred_check_branch
      %52 = sbr.rel (0) target = $region21
    $region20: #{tpu_custom_call.1} parent=1 // pred_region
      %54 = dma.done [#allocation8], 128
    $region21: #{tpu_custom_call.1} parent=1 // pred_fallthru
      _
    // Predicated region
    $region22: #{tpu_custom_call.1} parent=1 // pred_check
      _
    $region23: #{tpu_custom_call.1} parent=1 // pred_check_branch
      %56 = sbr.rel (0) target = $region25
    $region24: #{tpu_custom_call.1} parent=1 // pred_region
      %58 = dma.done [#allocation8], 64
    $region25: #{tpu_custom_call.1} parent=1 // pred_fallthru
      _
    %v59 = vld [vmem:[#allocation7] sm:$0xff]
    %p60 = scmp.eq.s32.totalorder 0, 0
    // Predicated region
    $region26: #{tpu_custom_call.1} parent=1 // pred_check
      %p61 = pneg %p60
    $region27: #{tpu_custom_call.1} parent=1 // pred_check_branch
      %63 = sbr.rel (%p61) target = $region29
    $region28: #{tpu_custom_call.1} parent=1 // pred_region
      %v64 = vld [vmem:[#allocation4] sm:$0xff]
      %v65 = vmul.f32 %v64, 1.442695
      %v66 = vpow.pop %v65
      %v67 = vmul.f32 %v66, %v64
      %vm68 = vcmask 130048
      %v70 = vsel %vm68, 1.0, 0
      %v73 = vsel %vm68, %v67, 0
      %75 = vmatpush.xpose.msra.mxu0 0.0
      %76 = vmatpush.xpose.msra.mxu0 0.0
      %77 = vmatpush.xpose.msra.mxu0 0.0
      %78 = vmatpush.xpose.msra.mxu0 0.0
      %79 = vmatpush.xpose.msra.mxu0 0.0
      %80 = vmatpush.xpose.msra.mxu0 0.0
      %81 = vmatpush.xpose.msra.mxu0 0.0
      %82 = vmatpush.xpose.msra.mxu0 0.0
      %83 = vmatpush.xpose.msra.mxu0 0.0
      %84 = vmatpush.xpose.msra.mxu0 0.0
      %85 = vmatpush.xpose.msra.mxu0 0.0
      %86 = vmatpush.xpose.msra.mxu0 0.0
      %87 = vmatpush.xpose.msra.mxu0 0.0
      %88 = vmatpush.xpose.msra.mxu0 0.0
      %89 = vmatpush.xpose.msra.mxu0 0.0
      %90 = vmatpush.xpose.msra.mxu0 %v73
      %91 = vmatmul.f32.gmra.mxu0 %v70
      %v92 = vpop.f32.mrf.mxu0
      %v93 = vadd.f32 0.0, %v92
      %94 = vdwg.mxu0
      %v95 = vsub.f32 0.0, %v93
      %vm96 = vcmask 57344
      %97 = vst.msk [vmem:[#allocation10] sm:$0x1] %vm96, %v95
      %v98 = vmul.f32 %v59, %v59
      %vm99 = vcmask 818176
      %v100 = vsel %vm99, 1.0, 0
      %v103 = vsel %vm99, %v98, 0
      %105 = vmatpush.xpose.msra.mxu0 0.0
      %106 = vmatpush.xpose.msra.mxu0 0.0
      %107 = vmatpush.xpose.msra.mxu0 0.0
      %108 = vmatpush.xpose.msra.mxu0 0.0
      %109 = vmatpush.xpose.msra.mxu0 0.0
      %110 = vmatpush.xpose.msra.mxu0 0.0
      %111 = vmatpush.xpose.msra.mxu0 0.0
      %112 = vmatpush.xpose.msra.mxu0 0.0
      %113 = vmatpush.xpose.msra.mxu0 0.0
      %114 = vmatpush.xpose.msra.mxu0 0.0
      %115 = vmatpush.xpose.msra.mxu0 0.0
      %116 = vmatpush.xpose.msra.mxu0 0.0
      %117 = vmatpush.xpose.msra.mxu0 0.0
      %118 = vmatpush.xpose.msra.mxu0 0.0
      %119 = vmatpush.xpose.msra.mxu0 0.0
      %120 = vmatpush.xpose.msra.mxu0 %v103
      %121 = vmatmul.f32.gmra.mxu0 %v100
      %v122 = vpop.f32.mrf.mxu0
      %v123 = vadd.f32 0.0, %v122
      %124 = vdwg.mxu0
      %125 = vst.msk [vmem:[#allocation2] sm:$0x1] %vm96, %v123
      %126 = vst.msk [vmem:[#allocation3] sm:$0x1] %vm96, inf
    $region29: #{tpu_custom_call.1} parent=1 // pred_fallthru
      _
    %v127 = vld [vmem:[#allocation9] sm:$0xf]
    %v128 = vmul.f32 %v127, %v127
    %vm129 = vcmask 814080
    %v130 = vsel %vm129, %v128, 0.0
    %131 = vadd.xlane.f32.xlu0 %v130
    %v132 = vpop.xlane.xlu0 %131
    %vm133 = vcmask 818176
    %v135 = vsel %vm133, %v127, 0
    %v138 = vsel %vm133, %v59, 0
    %140 = vmatpush.xpose.msra.mxu0 0.0
    %141 = vmatpush.xpose.msra.mxu0 0.0
    %142 = vmatpush.xpose.msra.mxu0 0.0
    %143 = vmatpush.xpose.msra.mxu0 0.0
    %144 = vmatpush.xpose.msra.mxu0 0.0
    %145 = vmatpush.xpose.msra.mxu0 0.0
    %146 = vmatpush.xpose.msra.mxu0 0.0
    %147 = vmatpush.xpose.msra.mxu0 0.0
    %148 = vmatpush.xpose.msra.mxu0 0.0
    %149 = vmatpush.xpose.msra.mxu0 0.0
    %150 = vmatpush.xpose.msra.mxu0 0.0
    %151 = vmatpush.xpose.msra.mxu0 0.0
    %152 = vmatpush.xpose.msra.mxu0 0.0
    %153 = vmatpush.xpose.msra.mxu0 0.0
    %154 = vmatpush.xpose.msra.mxu0 0.0
    %155 = vmatpush.xpose.msra.mxu0 %v138
    %156 = vmatmul.f32.gmra.mxu0 %v135
    %v157 = vpop.f32.mrf.mxu0
    %v158 = vadd.f32 0.0, %v157
    %159 = vdwg.mxu0
    %v160 = vld [vmem:[#allocation2] sm:$0x1]
    %v162 = vperm.slane %v160, 0
    %v164 = vadd.f32 %v162, %v132
    %v165 = vmul.f32 %v158, 2.0
    %v166 = vsub.f32 %v164, %v165
    %v167 = vmax.f32 %v166, 0.0
    %v168 = vld [vmem:[#allocation3] sm:$0x1]
    %vm169 = vcmask 60416
    %v170 = vsel %vm169, %v167, inf
    %v171 = vrot.slane %v170, 4
    %v172 = vmin.f32 %v170, %v171
    %v173 = vrot.slane %v172, 2
    %v174 = vmin.f32 %v172, %v173
    %v175 = vrot.slane %v174, 1
    %v176 = vmin.f32 %v174, %v175
    %v177 = vmin.f32 %v168, %v176
    %vm178 = vcmask 57344
    %179 = vst.msk [vmem:[#allocation3] sm:$0x1] %vm178, %v177
    // Predicated region
    $region30: #{tpu_custom_call.1} parent=1 // pred_check
      %p180 = pneg %p60
    $region31: #{tpu_custom_call.1} parent=1 // pred_check_branch
      %182 = sbr.rel (%p180) target = $region33
    $region32: #{tpu_custom_call.1} parent=1 // pred_region
      %v183 = vld [vmem:[#allocation3] sm:$0x1]
      %v184 = vrsqrt.pop %v183
      %v185 = vmul.f32 %v184, %v183
      %v186 = vmul.f32 %v185, %v184
      %v187 = vmul.f32 0.5, %v186
      %v188 = vsub.f32 1.5, %v187
      %v189 = vmul.f32 %v184, %v188
      %v190 = vmul.f32 %v183, %v189
      %vm191 = vcmp.eq.f32.partialorder %v183, inf
      %v192 = vsel %vm191, %v183, %v190
      %vm193 = vcmp.eq.f32.partialorder %v183, 0.0
      %v194 = vand.u32 %v183, 2147483648
      %v195 = vsel %vm193, %v194, %v192
      %196 = vst.msk [vmem:[#allocation11] sm:$0x1] %vm178, %v195
    $region33: #{tpu_custom_call.1} parent=1 // pred_fallthru
      _
    // Predicated region
    $region34: #{tpu_custom_call.1} parent=1 // pred_check
      _
    $region35: #{tpu_custom_call.1} parent=1 // pred_check_branch
      %198 = sbr.rel (0) target = $region37
    $region36: #{tpu_custom_call.1} parent=1 // pred_region
      %200 = vsyncadd [#allocation6], 0
      %s202 = sshll.u32 [#allocation10], 4
      %s203 = int_to_ptr.vmem [resolvable:$true] %s202
      %s204 = sshll.u32 %s3, 4
      %s205 = int_to_ptr.hbm [resolvable:$true] %s204
      %207 = dma.vmem_to_hbm [thread:$0]  %s203, 16, %s205, [#allocation6]
    $region37: #{tpu_custom_call.1} parent=1 // pred_fallthru
      _
    // Predicated region
    $region38: #{tpu_custom_call.1} parent=1 // pred_check
      _
    $region39: #{tpu_custom_call.1} parent=1 // pred_check_branch
      %209 = sbr.rel (0) target = $region41
    $region40: #{tpu_custom_call.1} parent=1 // pred_region
      %211 = vsyncadd [#allocation12], 0
      %s213 = sshll.u32 [#allocation11], 4
      %s214 = int_to_ptr.vmem [resolvable:$true] %s213
      %s215 = sshll.u32 %s4, 4
      %s216 = int_to_ptr.hbm [resolvable:$true] %s215
      %218 = dma.vmem_to_hbm [thread:$0]  %s214, 16, %s216, [#allocation12]
    $region41: #{tpu_custom_call.1} parent=1 // pred_fallthru
      _
    // Predicated region
    $region42: #{tpu_custom_call.1} parent=1 // pred_check
      _
    $region43: #{tpu_custom_call.1} parent=1 // pred_check_branch
      %220 = sbr.rel (0) target = $region45
    $region44: #{tpu_custom_call.1} parent=1 // pred_region
      %222 = dma.done [#allocation6], 16
    $region45: #{tpu_custom_call.1} parent=1 // pred_fallthru
      _
    // Predicated region
    $region46: #{tpu_custom_call.1} parent=1 // pred_check
      _
    $region47: #{tpu_custom_call.1} parent=1 // pred_check_branch
      %224 = sbr.rel (0) target = $region49
    $region48: #{tpu_custom_call.1} parent=1 // pred_region
      %226 = dma.done [#allocation12], 16
    $region49: #{tpu_custom_call.1} parent=1 // pred_fallthru
      _
    %227 = vsyncpa [#allocation5], 1
    %228 = vsyncpa [#allocation8], 1
    %229 = vsyncpa [#allocation6], 1
    %230 = vsyncpa [#allocation12], 1

</llo_original>
